<compile_context>
chip_gen: v6e
topology: v6e:2x2x1
jax: 0.10.0
libtpu: 0.0.40
codegen_flags: <defaults>
</compile_context>

<pallas_src>
import functools

import jax
import jax.numpy as jnp
from jax import lax
from jax.experimental import pallas as pl
from jax.experimental.pallas import tpu as pltpu

LANES = 128
SUBLANES = 8


def rope_kernel(pos_ref, theta_ref, phase_ref, out_ref, *, fold, d2):
    """out[r, j*d2 + m] = cos(pos[r, j] * theta[m] - phase[m]).

    phase[m] is 0 on even lanes (cos slots) and pi/2 on odd lanes (sin slots),
    so a single cos() covers the whole interleaved cos/sin output.
    """
    pos = pos_ref[...]        # (TR, fold)     float32
    theta = theta_ref[...]    # (1, fold*d2)   float32
    phase = phase_ref[...]    # (1, fold*d2)   float32
    tr = pos.shape[0]
    w = fold * d2

    if fold == 1:
        pos_wide = pos        # (TR, 1) broadcasts against (1, w) below
    else:
        # Replicate each folded position across its d2-lane group with a short
        # chain of lane-index selects (pure VPU work, no cross-lane shuffles).
        lane = lax.broadcasted_iota(jnp.int32, (tr, w), 1)
        pos_wide = jnp.broadcast_to(pos[:, 0:1], (tr, w))
        for j in range(1, fold):
            pos_wide = jnp.where(lane >= j * d2, pos[:, j:j + 1], pos_wide)

    angles = pos_wide * theta - phase
    out_ref[...] = jnp.cos(angles).astype(out_ref.dtype)


def rope_positional_encoding(positions, d_model, base=10000.0, row_tile=512,
                             out_dtype=jnp.float32):
    orig_shape = positions.shape
    pos_flat = positions.reshape(-1).astype(jnp.float32)
    n = pos_flat.shape[0]
    d2 = 2 * d_model

    # ---- lane-dense output width: fold several positions per output row so the
    # stored block's last dim is a multiple of 128 lanes (unmasked stores).
    if d2 % LANES == 0:
        fold = 1
    elif LANES % d2 == 0:
        fold = LANES // d2
    else:
        fold = 1  # TODO(synk): d2 neither divides nor is divided by 128 -> masked stores on the last lanes
    w = fold * d2

    # ---- row tiling: big tiles amortize grid overhead; cap the output block at
    # ~4 MiB per buffer so double-buffering fits scoped-VMEM defaults on
    # v5e (16 MiB), v6e (32 MiB) and v7x (32 MiB default / 64 MiB physical).
    rows = pl.cdiv(n, fold)                                 # output super-rows
    max_rows_by_vmem = max(
        SUBLANES, ((4 * 1024 * 1024) // (w * 4)) // SUBLANES * SUBLANES)
    rt = max(SUBLANES, (min(row_tile, max_rows_by_vmem) // SUBLANES) * SUBLANES)
    rt = min(rt, pl.cdiv(rows, SUBLANES) * SUBLANES)        # don't over-tile tiny inputs
    rows_pad = pl.cdiv(rows, rt) * rt
    n_pad = rows_pad * fold

    pos_padded = jnp.pad(pos_flat, (0, n_pad - n))
    pos2 = pos_padded.reshape(rows_pad, fold)

    # ---- per-lane constants (match torch __init__):
    #   theta duplicated x2 for the cos/sin interleave, tiled `fold` times,
    #   phase = pi/2 on odd (sin) lanes so sin(x) = cos(x - pi/2).
    i = jnp.arange(d_model)
    theta = jnp.asarray(base, jnp.float32) ** (
        -2.0 * (i // 2).astype(jnp.float32) / float(d_model))
    theta_row = jnp.tile(jnp.repeat(theta, 2), fold).reshape(1, w).astype(jnp.float32)
    phase_row = jnp.tile(
        (jnp.arange(d2) % 2).astype(jnp.float32) * (jnp.pi / 2.0), fold
    ).reshape(1, w)

    grid = (rows_pad // rt,)
    kernel = functools.partial(rope_kernel, fold=fold, d2=d2)
    out_bytes = rows_pad * w * jnp.dtype(out_dtype).itemsize

    out = pl.pallas_call(
        kernel,
        out_shape=jax.ShapeDtypeStruct((rows_pad, w), out_dtype),
        grid_spec=pltpu.PrefetchScalarGridSpec(
            num_scalar_prefetch=0,
            grid=grid,
            in_specs=[
                pl.BlockSpec((rt, fold), lambda r: (r, 0)),   # positions (folded rows)
                pl.BlockSpec((1, w), lambda r: (0, 0)),       # theta (broadcast)
                pl.BlockSpec((1, w), lambda r: (0, 0)),       # phase (broadcast)
            ],
            out_specs=pl.BlockSpec((rt, w), lambda r: (r, 0)),
        ),
        compiler_params=pltpu.CompilerParams(
            dimension_semantics=("parallel",)),
        cost_estimate=pl.CostEstimate(
            flops=2 * rows_pad * w,                 # mul + sub per element
            transcendentals=rows_pad * w,           # one cos per element
            bytes_accessed=out_bytes + n_pad * 4 + 2 * w * 4,
        ),
    )(pos2, theta_row, phase_row)

    out = out.reshape(n_pad, d2)[:n]                # contiguous view back to (N, 2*d_model)
    return out.reshape(*orig_shape, d2)


if __name__ == "__main__":
    key = jax.random.PRNGKey(0)
    B, S, d_model = 2, 8, 32
    base = 10000.0

    # integer positions (as the RoPE module would see), cast to float for compute
    positions = jax.random.randint(key, (B, S), 0, 1000).astype(jnp.float32)

    out = rope_positional_encoding(positions, d_model, base=base)
    out = jax.block_until_ready(out)

    # Pure-JAX reference (mirrors the PyTorch forward exactly).
    i = jnp.arange(d_model)
    theta_ref = base ** (-2.0 * (i // 2).astype(jnp.float32) / d_model)
    angles_ref = positions[..., None] * theta_ref
    ref = jnp.stack([jnp.cos(angles_ref), jnp.sin(angles_ref)], axis=-1).reshape(
        B, S, 2 * d_model
    )

    assert out.shape == (B, S, 2 * d_model)
    # The kernel evaluates sin(x) as cos(x - pi/2); with |angles| up to ~1e3 the
    # f32 phase subtraction rounds at ~6e-5, so compare slightly looser than
    # bit-exact (a structural bug — wrong theta/phase/fold mapping — would be O(1) off).
    assert jnp.allclose(out, ref, atol=5e-4, rtol=1e-4)
    print("KERNEL_OK")
</pallas_src>

<mosaic_0001>
module attributes {stable_mosaic.version = 11 : i64} {
  func.func @rope_kernel(%arg0: i32, %arg1: memref<8x2xf32, #tpu.memory_space<vmem>>, %arg2: memref<1x128xf32, #tpu.memory_space<vmem>>, %arg3: memref<1x128xf32, #tpu.memory_space<vmem>>, %arg4: memref<8x128xf32, #tpu.memory_space<vmem>>) attributes {dimension_semantics = [#tpu.dimension_semantics<parallel>], iteration_bounds = array<i64: 1>, scalar_prefetch = 0 : i64, scratch_operands = 0 : i64, tpu.core_type = #tpu.core_type<tc>, window_params = [{transform_indices = @transform_0, window_bounds = array<i64: 8, 2>}, {pipeline_mode = #tpu.pipeline_mode<synchronous>, transform_indices = @transform_1, window_bounds = array<i64: 1, 128>}, {pipeline_mode = #tpu.pipeline_mode<synchronous>, transform_indices = @transform_2, window_bounds = array<i64: 1, 128>}, {transform_indices = @transform_3, window_bounds = array<i64: 8, 128>}]} {
    %c0 = arith.constant 0 : index
    %c0_0 = arith.constant 0 : index
    %0 = vector.load %arg1[%c0, %c0_0] : memref<8x2xf32, #tpu.memory_space<vmem>>, vector<8x2xf32>
    %c0_1 = arith.constant 0 : index
    %c0_2 = arith.constant 0 : index
    %1 = vector.load %arg2[%c0_1, %c0_2] : memref<1x128xf32, #tpu.memory_space<vmem>>, vector<1x128xf32>
    %c0_3 = arith.constant 0 : index
    %c0_4 = arith.constant 0 : index
    %2 = vector.load %arg3[%c0_3, %c0_4] : memref<1x128xf32, #tpu.memory_space<vmem>>, vector<1x128xf32>
    %3 = tpu.iota {dimensions = array<i32: 1>} : vector<8x128xi32>
    %4 = vector.extract_strided_slice %0 {offsets = [0, 0], sizes = [8, 1], strides = [1, 1]} : vector<8x2xf32> to vector<8x1xf32>
    %5 = vector.shape_cast %4 : vector<8x1xf32> to vector<8x1xf32>
    %6 = vector.broadcast %5 : vector<8x1xf32> to vector<8x128xf32>
    %c64_i32 = arith.constant 64 : i32
    %7 = vector.broadcast %c64_i32 : i32 to vector<8x128xi32>
    %8 = arith.cmpi sge, %3, %7 : vector<8x128xi32>
    %9 = vector.extract_strided_slice %0 {offsets = [0, 1], sizes = [8, 1], strides = [1, 1]} : vector<8x2xf32> to vector<8x1xf32>
    %10 = vector.shape_cast %9 : vector<8x1xf32> to vector<8x1xf32>
    %11 = vector.broadcast %10 : vector<8x1xf32> to vector<8x128xf32>
    %12 = arith.select %8, %11, %6 : vector<8x128xi1>, vector<8x128xf32>
    %13 = vector.broadcast %1 : vector<1x128xf32> to vector<8x128xf32>
    %14 = arith.mulf %12, %13 : vector<8x128xf32>
    %15 = vector.broadcast %2 : vector<1x128xf32> to vector<8x128xf32>
    %16 = arith.subf %14, %15 : vector<8x128xf32>
    %17 = math.cos %16 : vector<8x128xf32>
    %c0_5 = arith.constant 0 : index
    %c0_6 = arith.constant 0 : index
    %18 = vector.load %arg4[%c0_5, %c0_6] : memref<8x128xf32, #tpu.memory_space<vmem>>, vector<8x128xf32>
    tpu.vector_store %arg4[%c0_5, %c0_6], %17 {strides = array<i32>} : memref<8x128xf32, #tpu.memory_space<vmem>>, vector<8x128xf32>,
    return
  }
  func.func @transform_0(%arg0: i32) -> (i32, i32) {
    %c0_i32 = arith.constant 0 : i32
    %c0_i32_0 = arith.constant 0 : i32
    return %arg0, %c0_i32 : i32, i32
  }
  func.func @transform_1(%arg0: i32) -> (i32, i32) {
    %c0_i32 = arith.constant 0 : i32
    %c0_i32_0 = arith.constant 0 : i32
    %c0_i32_1 = arith.constant 0 : i32
    return %c0_i32, %c0_i32_0 : i32, i32
  }
  func.func @transform_2(%arg0: i32) -> (i32, i32) {
    %c0_i32 = arith.constant 0 : i32
    %c0_i32_0 = arith.constant 0 : i32
    %c0_i32_1 = arith.constant 0 : i32
    return %c0_i32, %c0_i32_0 : i32, i32
  }
  func.func @transform_3(%arg0: i32) -> (i32, i32) {
    %c0_i32 = arith.constant 0 : i32
    %c0_i32_0 = arith.constant 0 : i32
    return %arg0, %c0_i32 : i32, i32
  }
}

</mosaic_0001>

<llo_original>
// kernel: tpu_custom_call.1
$region0: #{tpu_custom_call.1}
  #allocation0 [shape = 'u32[]', space=smem, size = 0x4, offset = 0x4, fixed_abs, tag = 'smem constant byte address 0x4 - core index']
  #allocation1 [shape = 'u32[144,128]{1,0:T(1,128)}', space=vmem, size = 0x12000, scoped, tag = 'internal scratch']
  %s0 = inlined_call_operand.vmem [shape: f32[8,2], index: 0, kind: input, shape index: {}]
  %s1 = inlined_call_operand.vmem [shape: f32[1,128], index: 1, kind: input, shape index: {}]
  %s2 = inlined_call_operand.vmem [shape: f32[1,128], index: 2, kind: input, shape index: {}]
  %s3 = inlined_call_operand.hbm [shape: f32[8,128], index: 3, kind: output, shape index: {}]
  %s4 = sld [smem:[#allocation0]]
  $region22: #{tpu_custom_call.1} parent=0
    _
  %s6 = ssub.s32 1, %s4
  %s7 = scalar_select 0, %s6, %s4
  $region1: #{tpu_custom_call.1} parent=0
    #allocation2 [shape = 'u8[4096]{0}', space=vmem, size = 0x1000, scoped, tag = 'output window, operand 0, single buffered']
    #allocation3 [shape = 's32[1]{0}', space=sflag, size = 0x4, scoped, tag = 'scoped memory for tpu_custom_call.1']
    %8 = vsyncpa [#allocation3], 0
    // Predicated region
    $region2: #{tpu_custom_call.1} parent=1 // pred_check
      _
    $region3: #{tpu_custom_call.1} parent=1 // pred_check_branch
      %10 = sbr.rel (0) target = $region5
    $region4: #{tpu_custom_call.1} parent=1 // pred_region
      _
    $region5: #{tpu_custom_call.1} parent=1 // pred_fallthru
      _
    // Predicated region
    $region6: #{tpu_custom_call.1} parent=1 // pred_check
      _
    $region7: #{tpu_custom_call.1} parent=1 // pred_check_branch
      %12 = sbr.rel (0) target = $region9
    $region8: #{tpu_custom_call.1} parent=1 // pred_region
      _
    $region9: #{tpu_custom_call.1} parent=1 // pred_fallthru
      _
    // Predicated region
    $region10: #{tpu_custom_call.1} parent=1 // pred_check
      _
    $region11: #{tpu_custom_call.1} parent=1 // pred_check_branch
      %14 = sbr.rel (0) target = $region13
    $region12: #{tpu_custom_call.1} parent=1 // pred_region
      _
    $region13: #{tpu_custom_call.1} parent=1 // pred_fallthru
      _
    %v15 = vld [vmem:[%s0] sm:$0xff]
    %v16 = vld [vmem:[%s1] sm:$0x1]
    %v17 = vld [vmem:[%s2] sm:$0x1]
    %v18 = vlaneseq
    %v19 = vand.u32 %v18, 127
    %21 = vset.pattern.permute.xlu0 0
    %22 = vperm.xlu0 %21, %v15
    %v23 = vpop.permute.xlu0 %22
    %vm25 = vcmp.ge.s32.totalorder %v19, 64
    %26 = vset.pattern.permute.xlu0 1
    %27 = vperm.xlu0 %26, %v15
    %v28 = vpop.permute.xlu0 %27
    %v30 = vsel %vm25, %v28, %v23
    %v32 = vlaneseq
    %v33 = vshrl.u32 %v32, 7
    %v34 = vsub.s32 0, %v33
    %v35 = vrot.slane %v16, %v34
    %v37 = vmul.f32 %v30, %v35
    %v39 = vlaneseq
    %v40 = vshrl.u32 %v39, 7
    %v41 = vsub.s32 0, %v40
    %v42 = vrot.slane %v17, %v41
    %v44 = vsub.f32 %v37, %v42
    %v45 = vand.u32 2147483647, %v44
    %vm46 = vcmp.le.f32.partialorder %v45, 0.7853982
    %vm47 = vcmp.lt.s32.totalorder %v44, 0
    %v48 = vand.u32 %v44, 2139095040
    %v49 = vshrl.u32 %v48, 23
    %v50 = vsub.s32 %v49, 127
    %v51 = vand.u32 2147483647, %v44
    %v52 = vand.u32 %v51, 8388607
    %v53 = vor.u32 %v52, 8388608
    %v54 = vsub.s32 0, %v53
    %v55 = vadd.s32 %v50, 1
    %vm56 = vcmp.gt.s32.totalorder %v55, 0
    %v57 = vsel %vm56, %v55, 0
    %v58 = vshrl.u32 %v57, 5
    %v59 = vand.u32 %v57, 31
    %v60 = vsub.s32 32, %v59
    %v61 = vshrl.u32 683565275, %v60
    %v62 = vshll.u32 683565275, %v59
    %v63 = vshrl.u32 2475754826, %v60
    %v64 = vor.u32 %v62, %v63
    %v65 = vshll.u32 2475754826, %v59
    %v66 = vshrl.u32 2131351028, %v60
    %v67 = vor.u32 %v65, %v66
    %v68 = vshll.u32 2131351028, %v59
    %v69 = vshrl.u32 2102212464, %v60
    %v70 = vor.u32 %v68, %v69
    %v71 = vshll.u32 2102212464, %v59
    %v72 = vshrl.u32 920167782, %v60
    %v73 = vor.u32 %v71, %v72
    %v74 = vshll.u32 920167782, %v59
    %v75 = vshrl.u32 1326507024, %v60
    %v76 = vor.u32 %v74, %v75
    %vm77 = vcmp.lt.s32.totalorder %v58, 1
    %vm78 = vcmp.lt.s32.totalorder %v58, 2
    %vm79 = vcmp.lt.s32.totalorder %v58, 3
    %vm80 = vcmp.lt.s32.totalorder %v58, 4
    %v81 = vsel %vm77, %v61, %v64
    %v82 = vsel %vm80, %v70, 2102212464
    %v83 = vsel %vm79, %v67, %v82
    %v84 = vsel %vm78, %v81, %v83
    %v85 = vsel %vm77, %v64, %v67
    %v86 = vsel %vm80, %v73, 920167782
    %v87 = vsel %vm79, %v70, %v86
    %v88 = vsel %vm78, %v85, %v87
    %v89 = vsel %vm77, %v67, %v70
    %v90 = vsel %vm80, %v76, 1326507024
    %v91 = vsel %vm79, %v73, %v90
    %v92 = vsel %vm78, %v89, %v91
    %v93 = vshll.u32 %v53, 8
    %v94 = vmul.u32.u64.compose %v93, %v92
    %v95 = vextract.low.u32 %v94
    %v96 = vextract.high.u32 %v94
    %v97 = vmul.u32.u64.compose %v93, %v88
    %v98 = vextract.low.u32 %v97
    %v99 = vextract.high.u32 %v97
    %v100 = vmul.u32 %v93, %v84
    %v101 = vadd.s32 %v96, %v98
    %vm102 = vc.u32 %v96, %v98
    %v103 = vadd.s32 %v99, 1
    %v104 = vsel %vm102, %v103, %v99
    %v105 = vadd.s32 %v100, %v104
    %v106 = vadd.s32 %v105, 536870912
    %v107 = vshrl.u32 %v106, 30
    %v108 = vshll.u32 %v107, 30
    %v109 = vsub.s32 %v105, %v108
    %vm110 = vcmp.lt.s32.totalorder %v109, 0
    %v111 = vsub.s32 0, %v109
    %v112 = vsel %vm110, %v111, %v109
    %v113 = vclz %v112
    %v114 = vsub.s32 %v113, 2
    %vm115 = vcmp.gt.s32.totalorder 0, %v114
    %v116 = vsel %vm115, 0, %v114
    %v117 = vsub.s32 32, %v116
    %v118 = vshll.u32 %v109, %v116
    %v119 = vshrl.u32 %v101, %v117
    %v120 = vor.u32 %v118, %v119
    %v121 = vsub.s32 4294967266, %v116
    %v122 = vadd.s32 %v121, 127
    %v123 = vshll.u32 %v122, 23
    %v124 = vor.u32 4788187, %v123
    %v125 = vand.u32 2147483647, %v124
    %v127 = vcvt.s32.f32 %v120
    %v128 = vmul.f32 %v127, %v125
    %v129 = vxor.u32 %v128, 2147483648
    %v130 = vsel %vm47, %v129, %v128
    %v131 = vsub.s32 4, %v107
    %v132 = vsel %vm47, %v131, %v107
    %v133 = vsel %vm46, %v44, %v130
    %v134 = vsel %vm46, 0, %v132
    %v135 = vcosq.f32.pop %v133
    %v136 = vsinq.f32.pop %v133
    %vm137 = vweird.f32 %v44
    %v138 = vand.u32 %v134, 3
    %vm139 = vcmp.lt.s32.totalorder %v138, 2
    %vm140 = vcmp.eq.s32.totalorder %v138, 0
    %v141 = vxor.u32 %v136, 2147483648
    %v142 = vsel %vm140, %v135, %v141
    %vm143 = vcmp.eq.s32.totalorder %v138, 2
    %v144 = vxor.u32 %v135, 2147483648
    %v145 = vsel %vm143, %v144, %v136
    %v146 = vsel %vm139, %v142, %v145
    %v147 = vsel %vm137, nan, %v146
    %148 = vst [vmem:[#allocation2] sm:$0xff] %v147
    // Predicated region
    $region14: #{tpu_custom_call.1} parent=1 // pred_check
      _
    $region15: #{tpu_custom_call.1} parent=1 // pred_check_branch
      %150 = sbr.rel (0) target = $region17
    $region16: #{tpu_custom_call.1} parent=1 // pred_region
      %s152 = ssub.s32 128, 128
      %153 = vsyncadd [#allocation3], %s152
      %s155 = sshll.u32 [#allocation2], 4
      %s156 = int_to_ptr.vmem [resolvable:$true] %s155
      %158 = dma.vmem_to_hbm [thread:$0]  %s156, 128, %s3, [#allocation3]
    $region17: #{tpu_custom_call.1} parent=1 // pred_fallthru
      _
    // Predicated region
    $region18: #{tpu_custom_call.1} parent=1 // pred_check
      _
    $region19: #{tpu_custom_call.1} parent=1 // pred_check_branch
      %160 = sbr.rel (0) target = $region21
    $region20: #{tpu_custom_call.1} parent=1 // pred_region
      %161 = dma.done [#allocation3], 128
    $region21: #{tpu_custom_call.1} parent=1 // pred_fallthru
      _
    %162 = vsyncpa [#allocation3], 1

</llo_original>
